<compile_context>
chip_gen: v6e
topology: v6e:2x2x1
jax: 0.10.0
libtpu: 0.0.40
codegen_flags: <defaults>
</compile_context>

<pallas_src>
from functools import partial

import jax
import jax.numpy as jnp
from jax.experimental import pallas as pl
from jax.experimental.pallas import tpu as pltpu


# ---------------------------------------------------------------------------
# Tiled linear projection kernel:  y = x @ w + b   (w stored as (in, out))
# ---------------------------------------------------------------------------

def _linear_kernel(x_ref, w_ref, b_ref, o_ref, acc_ref):
    k = pl.program_id(2)

    @pl.when(k == 0)
    def _():
        acc_ref[...] = jnp.zeros_like(acc_ref)

    acc_ref[...] += jnp.dot(
        x_ref[...].astype(jnp.bfloat16),
        w_ref[...].astype(jnp.bfloat16),
        preferred_element_type=jnp.float32,
    )

    @pl.when(k == pl.num_programs(2) - 1)
    def _():
        o_ref[...] = (acc_ref[...] + b_ref[...].astype(jnp.float32)).astype(o_ref.dtype)


def _pick_tile(dim, candidates):
    for c in candidates:
        if c <= dim and dim % c == 0:
            return c
    return dim


def pallas_linear(x, w, b):
    """y = x @ w + b  (== torch  x @ W.T + b, with w stored transposed)."""
    M, K = x.shape
    N = w.shape[1]
    tm = _pick_tile(M, (128, 256, 64, 32, 16, 8))   # 128 first -> parallel extent for 2 TCs
    tn = _pick_tile(N, (256, 128))
    tk = _pick_tile(K, (512, 256, 128))

    return pl.pallas_call(
        _linear_kernel,
        out_shape=jax.ShapeDtypeStruct((M, N), x.dtype),
        grid=(M // tm, N // tn, K // tk),
        in_specs=[
            pl.BlockSpec((tm, tk), lambda i, j, k: (i, k)),
            pl.BlockSpec((tk, tn), lambda i, j, k: (k, j)),
            pl.BlockSpec((1, tn), lambda i, j, k: (0, j)),
        ],
        out_specs=pl.BlockSpec((tm, tn), lambda i, j, k: (i, j)),
        scratch_shapes=[pltpu.VMEM((tm, tn), jnp.float32)],
        compiler_params=pltpu.CompilerParams(
            dimension_semantics=("parallel", "parallel", "arbitrary")),
        cost_estimate=pl.CostEstimate(
            flops=2 * M * N * K,
            transcendentals=0,
            bytes_accessed=4 * (M * K + K * N + M * N + N)),
    )(x, w, b.reshape(1, N))


# ---------------------------------------------------------------------------
# Block-sparse flash attention kernel
# ---------------------------------------------------------------------------

def _attention_kernel(scaling, num_heads, head_dim,
                      bmask_ref, q_ref, k_ref, v_ref, o_ref,
                      m_sc, l_sc, acc_sc):
    qi = pl.program_id(1)
    ki = pl.program_id(2)
    nk = pl.num_programs(2)

    @pl.when(ki == 0)
    def _():
        m_sc[...] = jnp.full_like(m_sc, -jnp.inf)
        l_sc[...] = jnp.zeros_like(l_sc)
        acc_sc[...] = jnp.zeros_like(acc_sc)

    # Skip fully-masked blocks entirely (block mask is block-constant, so no
    # per-element masking is needed inside a live tile).
    @pl.when(bmask_ref[qi, ki] != 0)
    def _():
        q = (q_ref[0] * scaling).astype(jnp.bfloat16)       # (nH, TQ, D)
        k = k_ref[0].astype(jnp.bfloat16)                   # (nH, TK, D)
        v = v_ref[0].astype(jnp.bfloat16)                   # (nH, TK, D)

        s = jnp.einsum('hqd,hkd->hqk', q, k,
                       preferred_element_type=jnp.float32)  # (nH, TQ, TK) f32

        m_prev = m_sc[...]                                  # (nH, TQ, 1)
        m_new = jnp.maximum(m_prev, jnp.max(s, axis=-1, keepdims=True))
        alpha = jnp.exp(m_prev - m_new)
        p = jnp.exp(s - m_new)                              # f32 softmax math (v5e-safe)

        l_sc[...] = alpha * l_sc[...] + jnp.sum(p, axis=-1, keepdims=True)
        pv = jnp.einsum('hqk,hkd->hqd', p.astype(jnp.bfloat16), v,
                        preferred_element_type=jnp.float32)  # (nH, TQ, D)
        acc_sc[...] = alpha * acc_sc[...] + pv
        m_sc[...] = m_new

    @pl.when(ki == nk - 1)
    def _():
        inv_l = pl.reciprocal(l_sc[...], approx=True)        # (nH, TQ, 1)
        out = acc_sc[...] * inv_l                            # (nH, TQ, D)
        # Finalize-only write into a lane-dense (TQ, H) output block, head by head.
        for h in range(num_heads):
            o_ref[0, :, pl.ds(h * head_dim, head_dim)] = out[h].astype(o_ref.dtype)


def pallas_attention(q, k, v, block_mask, scaling, out_dtype):
    """q/k/v: (B, nH, S, D); block_mask: (nb, nb) int32.  Returns (B, S, nH*D)."""
    B, nH, S, D = q.shape
    H = nH * D
    nb = block_mask.shape[0]
    TQ = S // nb          # kernel tile == mask block size
    TK = TQ

    q_spec = pl.BlockSpec((1, nH, TQ, D), lambda b, qi, ki, bm: (b, 0, qi, 0))
    kv_spec = pl.BlockSpec((1, nH, TK, D), lambda b, qi, ki, bm: (b, 0, ki, 0))

    return pl.pallas_call(
        partial(_attention_kernel, scaling, nH, D),
        out_shape=jax.ShapeDtypeStruct((B, S, H), out_dtype),
        grid_spec=pltpu.PrefetchScalarGridSpec(
            num_scalar_prefetch=1,
            grid=(B, nb, nb),
            in_specs=[q_spec, kv_spec, kv_spec],
            out_specs=pl.BlockSpec((1, TQ, H), lambda b, qi, ki, bm: (b, qi, 0)),
            scratch_shapes=[
                pltpu.VMEM((nH, TQ, 1), jnp.float32),   # running max
                pltpu.VMEM((nH, TQ, 1), jnp.float32),   # running denom
                pltpu.VMEM((nH, TQ, D), jnp.float32),   # output accumulator
            ],
        ),
        compiler_params=pltpu.CompilerParams(
            dimension_semantics=("parallel", "parallel", "arbitrary")),
        cost_estimate=pl.CostEstimate(
            flops=4 * B * nH * S * S * D,
            transcendentals=B * nH * S * S,
            bytes_accessed=4 * (3 * B * nH * S * D + B * S * H)),
    )(block_mask, q, k, v)


# ---------------------------------------------------------------------------
# Module glue (parameter init, block mask, forward)
# ---------------------------------------------------------------------------

def init_params(key, hidden_size):
    ks = jax.random.split(key, 2)

    def lin(kk, n_out):
        kw, kb = jax.random.split(kk)
        w = jax.random.normal(kw, (hidden_size, n_out), jnp.float32) * 0.02
        b = jax.random.normal(kb, (n_out,), jnp.float32) * 0.02
        return w, b

    return {
        "qkv": lin(ks[0], 3 * hidden_size),   # fused Q,K,V projection
        "o": lin(ks[1], hidden_size),
    }


def compute_block_mask(key, seq_len, block_size, sparsity_factor):
    """Compact (num_blocks, num_blocks) int32 mask, mirroring _compute_block_mask."""
    num_blocks = (seq_len + block_size - 1) // block_size
    rand_mask = jax.random.uniform(key, (num_blocks, num_blocks))
    sparse_mask = (rand_mask > sparsity_factor).astype(jnp.float32)
    causal_mask = jnp.triu(jnp.ones((num_blocks, num_blocks), jnp.float32))
    return (sparse_mask * causal_mask).astype(jnp.int32)


def sparse_attention_forward(params, hidden_states, attention_mask=None, *,
                             num_heads, block_size, sparsity_factor, mask_key):
    B, S, H = hidden_states.shape
    head_dim = H // num_heads
    scaling = head_dim ** (-0.5)
    assert S % block_size == 0, "kernel assumes seq_len % block_size == 0"
    assert block_size % 8 == 0, "kernel tiles need sublane-aligned block_size"

    x2 = hidden_states.reshape(B * S, H)

    # Fused QKV projection: reads x once, one pipelined pallas_call.
    qkv = pallas_linear(x2, *params["qkv"])            # (B*S, 3H)
    q, k, v = jnp.split(qkv, 3, axis=-1)

    def to_heads(t):
        return t.reshape(B, S, num_heads, head_dim).transpose(0, 2, 1, 3)

    qh, kh, vh = to_heads(q), to_heads(k), to_heads(v)  # (B, nH, S, D)

    if attention_mask is None:
        block_mask = compute_block_mask(mask_key, S, block_size, sparsity_factor)  # (nb, nb)
        dense_mask = jnp.repeat(
            jnp.repeat(block_mask.astype(jnp.float32), block_size, axis=0),
            block_size, axis=1)[None, None]                                         # (1,1,S,S)
    else:
        # TODO(synk): externally provided masks are assumed block-constant at block_size granularity.
        dense_mask = attention_mask
        block_mask = (attention_mask[0, 0, ::block_size, ::block_size] > 0).astype(jnp.int32)

    # Block-sparse flash attention; output already in (B, S, H) layout (no inverse
    # head transpose needed, lane-dense stores).
    attn = pallas_attention(qh, kh, vh, block_mask, scaling, hidden_states.dtype)

    out = pallas_linear(attn.reshape(B * S, H), *params["o"]).reshape(B, S, H)
    return out, dense_mask


# ---------------------------------------------------------------------------

if __name__ == "__main__":
    key = jax.random.PRNGKey(0)
    k_params, k_x, k_mask = jax.random.split(key, 3)

    B, S, H, num_heads = 2, 128, 128, 4
    block_size = 32
    # sparsity_factor=0.0 keeps every upper-triangular block, guaranteeing no
    # fully-masked softmax row (which would be NaN, matching torch) in the demo.
    sparsity_factor = 0.0

    params = init_params(k_params, H)
    x = jax.random.normal(k_x, (B, S, H), jnp.float32)

    out, mask = sparse_attention_forward(
        params, x,
        num_heads=num_heads,
        block_size=block_size,
        sparsity_factor=sparsity_factor,
        mask_key=k_mask,
    )
    jax.block_until_ready(out)
    jax.block_until_ready(mask)

    assert out.shape == (B, S, H) and mask.shape == (1, 1, S, S)
    assert bool(jnp.all(jnp.isfinite(out)))
    print("KERNEL_OK")
</pallas_src>

<mosaic_0001>
module attributes {stable_mosaic.version = 11 : i64} {
  func.func @_linear_kernel(%arg0: i32, %arg1: i32, %arg2: i32, %arg3: memref<128x128xf32, #tpu.memory_space<vmem>>, %arg4: memref<128x128xf32, #tpu.memory_space<vmem>>, %arg5: memref<1x128xf32, #tpu.memory_space<vmem>>, %arg6: memref<128x128xf32, #tpu.memory_space<vmem>>, %arg7: memref<128x128xf32, #tpu.memory_space<vmem>>) attributes {dimension_semantics = [#tpu.dimension_semantics<parallel>, #tpu.dimension_semantics<parallel>, #tpu.dimension_semantics<arbitrary>], iteration_bounds = array<i64: 2, 3, 1>, scalar_prefetch = 0 : i64, scratch_operands = 1 : i64, tpu.core_type = #tpu.core_type<tc>, window_params = [{transform_indices = @transform_0, window_bounds = array<i64: 128, 128>}, {transform_indices = @transform_1, window_bounds = array<i64: 128, 128>}, {transform_indices = @transform_2, window_bounds = array<i64: 1, 128>}, {transform_indices = @transform_3, window_bounds = array<i64: 128, 128>}]} {
    %c0_i32 = arith.constant 0 : i32
    %0 = arith.cmpi eq, %arg2, %c0_i32 : i32
    %1 = arith.extui %0 : i1 to i32
    %c0_i32_0 = arith.constant 0 : i32
    %2 = arith.cmpi ne, %1, %c0_i32_0 : i32
    scf.if %2 {
      %cst_10 = arith.constant 0.000000e+00 : f32
      %14 = vector.broadcast %cst_10 : f32 to vector<128x128xf32>
      %c0_11 = arith.constant 0 : index
      %c0_12 = arith.constant 0 : index
      %15 = vector.load %arg7[%c0_11, %c0_12] : memref<128x128xf32, #tpu.memory_space<vmem>>, vector<128x128xf32>
      tpu.vector_store %arg7[%c0_11, %c0_12], %14 {strides = array<i32>} : memref<128x128xf32, #tpu.memory_space<vmem>>, vector<128x128xf32>,
    } else {
    }
    %c0 = arith.constant 0 : index
    %c0_1 = arith.constant 0 : index
    %3 = vector.load %arg7[%c0, %c0_1] : memref<128x128xf32, #tpu.memory_space<vmem>>, vector<128x128xf32>
    %c0_2 = arith.constant 0 : index
    %c0_3 = arith.constant 0 : index
    %4 = vector.load %arg3[%c0_2, %c0_3] : memref<128x128xf32, #tpu.memory_space<vmem>>, vector<128x128xf32>
    %5 = arith.truncf %4 : vector<128x128xf32> to vector<128x128xbf16>
    %c0_4 = arith.constant 0 : index
    %c0_5 = arith.constant 0 : index
    %6 = vector.load %arg4[%c0_4, %c0_5] : memref<128x128xf32, #tpu.memory_space<vmem>>, vector<128x128xf32>
    %7 = arith.truncf %6 : vector<128x128xf32> to vector<128x128xbf16>
    %cst = arith.constant dense<0.000000e+00> : vector<128x128xf32>
    %8 = tpu.matmul %5, %7, %cst {dimension_numbers = #tpu.dot_dimension_numbers<[1], [0], [0], [1], [0, 0, 1, 1], [], []>} : vector<128x128xbf16>, vector<128x128xbf16>, vector<128x128xf32> -> vector<128x128xf32>
    %9 = arith.addf %3, %8 : vector<128x128xf32>
    %c0_6 = arith.constant 0 : index
    %c0_7 = arith.constant 0 : index
    %10 = vector.load %arg7[%c0_6, %c0_7] : memref<128x128xf32, #tpu.memory_space<vmem>>, vector<128x128xf32>
    tpu.vector_store %arg7[%c0_6, %c0_7], %9 {strides = array<i32>} : memref<128x128xf32, #tpu.memory_space<vmem>>, vector<128x128xf32>,
    %c0_i32_8 = arith.constant 0 : i32
    %11 = arith.cmpi eq, %arg2, %c0_i32_8 : i32
    %12 = arith.extui %11 : i1 to i32
    %c0_i32_9 = arith.constant 0 : i32
    %13 = arith.cmpi ne, %12, %c0_i32_9 : i32
    scf.if %13 {
      %c0_10 = arith.constant 0 : index
      %c0_11 = arith.constant 0 : index
      %14 = vector.load %arg7[%c0_10, %c0_11] : memref<128x128xf32, #tpu.memory_space<vmem>>, vector<128x128xf32>
      %c0_12 = arith.constant 0 : index
      %c0_13 = arith.constant 0 : index
      %15 = vector.load %arg5[%c0_12, %c0_13] : memref<1x128xf32, #tpu.memory_space<vmem>>, vector<1x128xf32>
      %16 = vector.broadcast %15 : vector<1x128xf32> to vector<128x128xf32>
      %17 = arith.addf %14, %16 : vector<128x128xf32>
      %c0_14 = arith.constant 0 : index
      %c0_15 = arith.constant 0 : index
      %18 = vector.load %arg6[%c0_14, %c0_15] : memref<128x128xf32, #tpu.memory_space<vmem>>, vector<128x128xf32>
      tpu.vector_store %arg6[%c0_14, %c0_15], %17 {strides = array<i32>} : memref<128x128xf32, #tpu.memory_space<vmem>>, vector<128x128xf32>,
    } else {
    }
    return
  }
  func.func @transform_0(%arg0: i32, %arg1: i32, %arg2: i32) -> (i32, i32) {
    %c0_i32 = arith.constant 0 : i32
    return %arg0, %arg2 : i32, i32
  }
  func.func @transform_1(%arg0: i32, %arg1: i32, %arg2: i32) -> (i32, i32) {
    %c0_i32 = arith.constant 0 : i32
    return %arg2, %arg1 : i32, i32
  }
  func.func @transform_2(%arg0: i32, %arg1: i32, %arg2: i32) -> (i32, i32) {
    %c0_i32 = arith.constant 0 : i32
    %c0_i32_0 = arith.constant 0 : i32
    return %c0_i32, %arg1 : i32, i32
  }
  func.func @transform_3(%arg0: i32, %arg1: i32, %arg2: i32) -> (i32, i32) {
    %c0_i32 = arith.constant 0 : i32
    return %arg0, %arg1 : i32, i32
  }
}

</mosaic_0001>

<llo_original>
// kernel: tpu_custom_call.1
$region0: #{tpu_custom_call.1}
  #allocation0 [shape = 'u32[]', space=smem, size = 0x4, offset = 0x4, fixed_abs, tag = 'smem constant byte address 0x4 - core index']
  #allocation1 [shape = 'u32[144,128]{1,0:T(1,128)}', space=vmem, size = 0x12000, scoped, tag = 'internal scratch']
  #allocation2 [shape = 'f32[128,128]{1,0:T(8,128)}', space=vmem, size = 0x10000, scoped, tag = 'scratch operand']
  %s0 = inlined_call_operand.hbm [shape: f32[256,128], index: 0, kind: input, shape index: {}]
  %s1 = inlined_call_operand.hbm [shape: f32[128,384], index: 1, kind: input, shape index: {}]
  %s2 = inlined_call_operand.vmem [shape: f32[1,384], index: 2, kind: input, shape index: {}]
  %s3 = inlined_call_operand.hbm [shape: f32[256,384], index: 3, kind: output, shape index: {}]
  %s4 = sld [smem:[#allocation0]]
  $region61: #{tpu_custom_call.1} parent=0
    _
  %s6 = ssub.s32 1, %s4
  %s7 = scalar_select 0, %s6, %s4
  $region1: #{tpu_custom_call.1} parent=0
    #allocation3 [shape = 'u8[131072]{0}', space=vmem, size = 0x20000, scoped, tag = 'input window, operand 0']
    #allocation4 [shape = 's32[2]{0}', space=sflag, size = 0x8, scoped, tag = 'scoped memory for tpu_custom_call.1']
    #allocation5 [shape = 's32[2]{0}', space=sflag, size = 0x8, scoped, tag = 'scoped memory for tpu_custom_call.1']
    #allocation6 [shape = 'u8[131072]{0}', space=vmem, size = 0x20000, scoped, tag = 'input window, operand 1']
    #allocation7 [shape = 's32[2]{0}', space=sflag, size = 0x8, scoped, tag = 'scoped memory for tpu_custom_call.1']
    #allocation8 [shape = 'u8[131072]{0}', space=vmem, size = 0x20000, scoped, tag = 'output window, operand 0']
    %8 = vsyncpa [#allocation4], 0
    %s9 = scalar_lea.sflag [#allocation4], 1
    %10 = vsyncpa %s9, 0
    %11 = vsyncpa [#allocation7], 0
    %s12 = scalar_lea.sflag [#allocation7], 1
    %13 = vsyncpa %s12, 0
    %14 = vsyncpa [#allocation5], 0
    %s15 = scalar_lea.sflag [#allocation5], 1
    %16 = vsyncpa %s15, 0
    loop: start=0, step=1, limit=8
    $region2: #{tpu_custom_call.1} parent=1 // loop_pre_header
      _
    $region3: #{tpu_custom_call.1} parent=1 // loop_header
      %s18 = sphi 0, %s22
      %p19 = scmp.ge.s32.totalorder %s18, 8
      %s25 = sphi 0, %s44
      %s26 = sphi 0, %s40
      %s27 = sphi 0, %s36
      %s28 = sphi 0, %s25
      %s29 = sphi 0, %s26
      %s30 = sphi 0, %s27
      %s31 = sphi 0, %s28
      %s32 = sphi 0, %s29
      %s33 = sphi 0, %s30
      %s49 = sphi 0, %s51
      %s52 = sphi 0, %s49
      %s53 = sphi 0, %s52
      %s69 = sphi 0, %s53
      %s77 = sphi 0, %s79
      %s80 = sphi 0, %s77
      %s81 = sphi 0, %s80
      %s97 = sphi 0, %s81
      %s103 = sphi 0, %s105
      %s106 = sphi 0, %s103
      %s107 = sphi 0, %s106
      %s123 = sphi 0, %s107
      %s131 = sphi 0, %s133
      %s134 = sphi 0, %s131
      %s135 = sphi 0, %s134
      %s151 = sphi 0, %s135
    $region4: #{tpu_custom_call.1} parent=1 // loop_header_branch
      %21 = sbr.rel (%p19) target = $region8
    $region5: #{tpu_custom_call.1} parent=1 // loop_body
      %s23 = ssub.s32 %s18, 1
      %s24 = ssub.s32 %s18, 2
      %s34 = sadd.s32 1, %s27
      %p35 = scmp.ge.s32.totalorder %s34, 1
      %s36 = scalar_select %p35, 0, %s34
      %s37 = sadd.s32 1, %s26
      %s38 = scalar_select %p35, %s37, %s26
      %p39 = scmp.ge.s32.totalorder %s38, 3
      %s40 = scalar_select %p39, 0, %s38
      %s41 = sadd.s32 1, %s25
      %s42 = scalar_select %p39, %s41, %s25
      %p43 = scmp.ge.s32.totalorder %s42, 2
      %s44 = scalar_select %p43, 0, %s42
      %s45 = ssub.s32 %s25, %s44
      %s46 = ssub.s32 %s27, %s36
      %s47 = sor.u32 %s45, %s46
      %p48 = scmp.eq.s32.totalorder %s47, 0
      %s50 = sadd.s32 %s49, 1
      %s51 = scalar_select %p48, %s49, %s50
      %p54 = pneg %p48
      %p55 = scmp.eq.s32.totalorder %s18, 5
      %p56 = por %p54, %p55
      %p57 = scmp.ne.s32.totalorder %s49, %s52
      %p58 = scmp.eq.s32.totalorder %s18, 0
      %p59 = por %p57, %p58
      %p60 = scmp.ne.s32.totalorder %s49, %s52
      %p61 = scmp.eq.s32.totalorder %s23, 5
      %p62 = por %p60, %p61
      %p63 = scmp.ne.s32.totalorder %s52, %s53
      %p64 = scmp.eq.s32.totalorder %s23, 0
      %p65 = por %p63, %p64
      %p66 = scmp.ne.s32.totalorder %s52, %s53
      %p67 = scmp.eq.s32.totalorder %s24, 5
      %p68 = por %p66, %p67
      %p70 = scmp.ne.s32.totalorder %s53, %s69
      %p71 = scmp.eq.s32.totalorder %s24, 0
      %p72 = por %p70, %p71
      %s73 = ssub.s32 %s27, %s36
      %s74 = ssub.s32 %s26, %s40
      %s75 = sor.u32 %s73, %s74
      %p76 = scmp.eq.s32.totalorder %s75, 0
      %s78 = sadd.s32 %s77, 1
      %s79 = scalar_select %p76, %s77, %s78
      %p82 = pneg %p76
      %p83 = scmp.eq.s32.totalorder %s18, 5
      %p84 = por %p82, %p83
      %p85 = scmp.ne.s32.totalorder %s77, %s80
      %p86 = scmp.eq.s32.totalorder %s18, 0
      %p87 = por %p85, %p86
      %p88 = scmp.ne.s32.totalorder %s77, %s80
      %p89 = scmp.eq.s32.totalorder %s23, 5
      %p90 = por %p88, %p89
      %p91 = scmp.ne.s32.totalorder %s80, %s81
      %p92 = scmp.eq.s32.totalorder %s23, 0
      %p93 = por %p91, %p92
      %p94 = scmp.ne.s32.totalorder %s80, %s81
      %p95 = scmp.eq.s32.totalorder %s24, 5
      %p96 = por %p94, %p95
      %p98 = scmp.ne.s32.totalorder %s81, %s97
      %p99 = scmp.eq.s32.totalorder %s24, 0
      %p100 = por %p98, %p99
      %s101 = ssub.s32 %s26, %s40
      %p102 = scmp.eq.s32.totalorder %s101, 0
      %s104 = sadd.s32 %s103, 1
      %s105 = scalar_select %p102, %s103, %s104
      %p108 = pneg %p102
      %p109 = scmp.eq.s32.totalorder %s18, 5
      %p110 = por %p108, %p109
      %p111 = scmp.ne.s32.totalorder %s103, %s106
      %p112 = scmp.eq.s32.totalorder %s18, 0
      %p113 = por %p111, %p112
      %p114 = scmp.ne.s32.totalorder %s103, %s106
      %p115 = scmp.eq.s32.totalorder %s23, 5
      %p116 = por %p114, %p115
      %p117 = scmp.ne.s32.totalorder %s106, %s107
      %p118 = scmp.eq.s32.totalorder %s23, 0
      %p119 = por %p117, %p118
      %p120 = scmp.ne.s32.totalorder %s106, %s107
      %p121 = scmp.eq.s32.totalorder %s24, 5
      %p122 = por %p120, %p121
      %p124 = scmp.ne.s32.totalorder %s107, %s123
      %p125 = scmp.eq.s32.totalorder %s24, 0
      %p126 = por %p124, %p125
      %s127 = ssub.s32 %s25, %s44
      %s128 = ssub.s32 %s26, %s40
      %s129 = sor.u32 %s127, %s128
      %p130 = scmp.eq.s32.totalorder %s129, 0
      %s132 = sadd.s32 %s131, 1
      %s133 = scalar_select %p130, %s131, %s132
      %p136 = pneg %p130
      %p137 = scmp.eq.s32.totalorder %s18, 5
      %p138 = por %p136, %p137
      %p139 = scmp.ne.s32.totalorder %s131, %s134
      %p140 = scmp.eq.s32.totalorder %s18, 0
      %p141 = por %p139, %p140
      %p142 = scmp.ne.s32.totalorder %s131, %s134
      %p143 = scmp.eq.s32.totalorder %s23, 5
      %p144 = por %p142, %p143
      %p145 = scmp.ne.s32.totalorder %s134, %s135
      %p146 = scmp.eq.s32.totalorder %s23, 0
      %p147 = por %p145, %p146
      %p148 = scmp.ne.s32.totalorder %s134, %s135
      %p149 = scmp.eq.s32.totalorder %s24, 5
      %p150 = por %p148, %p149
      %p152 = scmp.ne.s32.totalorder %s135, %s151
      %p153 = scmp.eq.s32.totalorder %s24, 0
      %p154 = por %p152, %p153
      %p155 = scmp.le.s32.totalorder 1, %s18
      %p156 = scmp.lt.s32.totalorder %s18, 7
      %p157 = pnand %p155, %p156
      %p158 = pneg %p157
      // Predicated region
      $region9: #{tpu_custom_call.1} parent=5 // pred_check
        _
      $region10: #{tpu_custom_call.1} parent=5 // pred_check_branch
        %160 = sbr.rel (%p157) target = $region12
      $region11: #{tpu_custom_call.1} parent=5 // pred_region
        %s161 = ssub.s32 %s18, 1
      $region12: #{tpu_custom_call.1} parent=5 // pred_fallthru
        _
      %p162 = scmp.lt.s32.totalorder %s18, 6
      // Predicated region
      $region13: #{tpu_custom_call.1} parent=5 // pred_check
        %p163 = pneg %p162
      $region14: #{tpu_custom_call.1} parent=5 // pred_check_branch
        %165 = sbr.rel (%p163) target = $region16
      $region15: #{tpu_custom_call.1} parent=5 // pred_region
        // Predicated region
        $region17: #{tpu_custom_call.1} parent=15 // pred_check
          %p166 = pneg %p59
        $region18: #{tpu_custom_call.1} parent=15 // pred_check_branch
          %168 = sbr.rel (%p166) target = $region20
        $region19: #{tpu_custom_call.1} parent=15 // pred_region
          %s169 = sand.u32 %s49, 1
          %s170 = scalar_lea.sflag [#allocation4], %s169
          %s171 = sand.u32 %s49, 1
          %s172 = smul.addr %s171, 128
          %s173 = scalar_lea.vmem [#allocation3], %s172
          %s174 = smul.u32 16, %s25
          %s176 = ssub.s32 2048, 2048
          %177 = vsyncadd %s170, %s176
          %s178 = sadd.s32 %s27, %s174
          %s179 = smul.addr %s178, 128
          %s180 = scalar_lea.hbm %s0, %s179
          %s181 = sshll.u32 %s173, 4
          %s182 = int_to_ptr.vmem [resolvable:$true] %s181
          %187 = dma.hbm_to_vmem [thread:$0]  %s180, 2048, %s182, %s170, 128, 128, 8
        $region20: #{tpu_custom_call.1} parent=15 // pred_fallthru
          _
        // Predicated region
        $region21: #{tpu_custom_call.1} parent=15 // pred_check
          %p188 = pneg %p87
        $region22: #{tpu_custom_call.1} parent=15 // pred_check_branch
          %190 = sbr.rel (%p188) target = $region24
        $region23: #{tpu_custom_call.1} parent=15 // pred_region
          %s191 = sand.u32 %s77, 1
          %s192 = scalar_lea.sflag [#allocation7], %s191
          %s193 = sand.u32 %s77, 1
          %s194 = smul.addr %s193, 128
          %s195 = scalar_lea.vmem [#allocation6], %s194
          %s196 = smul.u32 16, %s27
          %s198 = ssub.s32 2048, 2048
          %199 = vsyncadd %s192, %s198
          %s200 = smul.addr %s196, 3
          %s201 = sadd.s32 %s26, %s200
          %s202 = smul.addr %s201, 128
          %s203 = scalar_lea.hbm %s1, %s202
          %s204 = sshll.u32 %s195, 4
          %s205 = int_to_ptr.vmem [resolvable:$true] %s204
          %210 = dma.hbm_to_vmem [thread:$0]  %s203, 2048, %s205, %s192, 384, 128, 8
        $region24: #{tpu_custom_call.1} parent=15 // pred_fallthru
          _
        // Predicated region
        $region25: #{tpu_custom_call.1} parent=15 // pred_check
          %p211 = pneg %p113
        $region26: #{tpu_custom_call.1} parent=15 // pred_check_branch
          %213 = sbr.rel (%p211) target = $region28
        $region27: #{tpu_custom_call.1} parent=15 // pred_region
          %p214 = scmp.lt.s32.totalorder %s26, 2
          %s215 = scalar_select %p214, %s26, 2
          %s216 = scalar_lea.vmem %s2, %s215
        $region28: #{tpu_custom_call.1} parent=15 // pred_fallthru
          _
      $region16: #{tpu_custom_call.1} parent=5 // pred_fallthru
        _
      %p217 = scmp.le.s32.totalorder 1, %s18
      %p218 = scmp.lt.s32.totalorder %s18, 7
      %p219 = pnand %p217, %p218
      %p220 = pneg %p219
      // Predicated region
      $region29: #{tpu_custom_call.1} parent=5 // pred_check
        _
      $region30: #{tpu_custom_call.1} parent=5 // pred_check_branch
        %222 = sbr.rel (%p219) target = $region32
      $region31: #{tpu_custom_call.1} parent=5 // pred_region
        %s223 = ssub.s32 %s18, 1
        %s224 = sand.u32 %s52, 1
        %s225 = scalar_lea.sflag [#allocation4], %s224
        %s226 = sand.u32 %s52, 1
        %s227 = smul.addr %s226, 128
        %s228 = scalar_lea.vmem [#allocation3], %s227
        // Predicated region
        $region33: #{tpu_custom_call.1} parent=31 // pred_check
          %p229 = pneg %p65
        $region34: #{tpu_custom_call.1} parent=31 // pred_check_branch
          %231 = sbr.rel (%p229) target = $region36
        $region35: #{tpu_custom_call.1} parent=31 // pred_region
          %232 = dma.done %s225, 2048
        $region36: #{tpu_custom_call.1} parent=31 // pred_fallthru
          _
        %s233 = sand.u32 %s80, 1
        %s234 = scalar_lea.sflag [#allocation7], %s233
        %s235 = sand.u32 %s80, 1
        %s236 = smul.addr %s235, 128
        %s237 = scalar_lea.vmem [#allocation6], %s236
        // Predicated region
        $region37: #{tpu_custom_call.1} parent=31 // pred_check
          %p238 = pneg %p93
        $region38: #{tpu_custom_call.1} parent=31 // pred_check_branch
          %240 = sbr.rel (%p238) target = $region40
        $region39: #{tpu_custom_call.1} parent=31 // pred_region
          %241 = dma.done %s234, 2048
        $region40: #{tpu_custom_call.1} parent=31 // pred_fallthru
          _
        %s242 = sand.u32 %s52, 1
        %s243 = scalar_lea.sflag [#allocation4], %s242
        %s244 = sand.u32 %s52, 1
        %s245 = smul.addr %s244, 128
        %s246 = scalar_lea.vmem [#allocation3], %s245
        %p247 = pneg %p65
        %p248 = pneg %p62
        %s249 = sand.u32 %s80, 1
        %s250 = scalar_lea.sflag [#allocation7], %s249
        %s251 = sand.u32 %s80, 1
        %s252 = smul.addr %s251, 128
        %s253 = scalar_lea.vmem [#allocation6], %s252
        %p254 = pneg %p93
        %p255 = pneg %p90
        %p256 = scmp.lt.s32.totalorder %s29, 2
        %s257 = scalar_select %p256, %s29, 2
        %s258 = scalar_lea.vmem %s2, %s257
        %p259 = pneg %p119
        %p260 = pneg %p116
        %p261 = pneg %p147
        %p262 = pneg %p144
        %s263 = sand.u32 %s134, 1
        %s264 = scalar_lea.sflag [#allocation5], %s263
        %s265 = sand.u32 %s134, 1
        %s266 = smul.addr %s265, 128
        %s267 = scalar_lea.vmem [#allocation8], %s266
        %s268 = smul.u32 16, %s28
        %s269 = smul.u32 16, %s30
        %p270 = scmp.lt.s32.totalorder %s29, 2
        %s271 = scalar_select %p270, %s29, 2
        %s272 = scalar_lea.vmem %s2, %s271
        %s273 = smul.u32 16, %s28
        %p275 = scmp.eq.s32.totalorder %s30, 0
        // Predicated region
        $region41: #{tpu_custom_call.1} parent=31 // pred_check
          %p276 = pneg %p275
        $region42: #{tpu_custom_call.1} parent=31 // pred_check_branch
          %278 = sbr.rel (%p276) target = $region44
        $region43: #{tpu_custom_call.1} parent=31 // pred_region
          %279 = vst [vmem:[#allocation2] sm:$0xff] 0.0
          %280 = vst [vmem:[#allocation2 + $0x8] sm:$0xff] 0.0
          %281 = vst [vmem:[#allocation2 + $0x10] sm:$0xff] 0.0
          %282 = vst [vmem:[#allocation2 + $0x18] sm:$0xff] 0.0
          %283 = vst [vmem:[#allocation2 + $0x20] sm:$0xff] 0.0
          %284 = vst [vmem:[#allocation2 + $0x28] sm:$0xff] 0.0
          %285 = vst [vmem:[#allocation2 + $0x30] sm:$0xff] 0.0
          %286 = vst [vmem:[#allocation2 + $0x38] sm:$0xff] 0.0
          %287 = vst [vmem:[#allocation2 + $0x40] sm:$0xff] 0.0
          %288 = vst [vmem:[#allocation2 + $0x48] sm:$0xff] 0.0
          %289 = vst [vmem:[#allocation2 + $0x50] sm:$0xff] 0.0
          %290 = vst [vmem:[#allocation2 + $0x58] sm:$0xff] 0.0
          %291 = vst [vmem:[#allocation2 + $0x60] sm:$0xff] 0.0
          %292 = vst [vmem:[#allocation2 + $0x68] sm:$0xff] 0.0
          %293 = vst [vmem:[#allocation2 + $0x70] sm:$0xff] 0.0
          %294 = vst [vmem:[#allocation2 + $0x78] sm:$0xff] 0.0
        $region44: #{tpu_custom_call.1} parent=31 // pred_fallthru
          _
        %v295 = vld [vmem:[#allocation2] sm:$0xff]
        %v296 = vld [vmem:[#allocation2 + $0x8] sm:$0xff]
        %v297 = vld [vmem:[#allocation2 + $0x10] sm:$0xff]
        %v298 = vld [vmem:[#allocation2 + $0x18] sm:$0xff]
        %v299 = vld [vmem:[#allocation2 + $0x20] sm:$0xff]
        %v300 = vld [vmem:[#allocation2 + $0x28] sm:$0xff]
        %v301 = vld [vmem:[#allocation2 + $0x30] sm:$0xff]
        %v302 = vld [vmem:[#allocation2 + $0x38] sm:$0xff]
        %v303 = vld [vmem:[#allocation2 + $0x40] sm:$0xff]
        %v304 = vld [vmem:[#allocation2 + $0x48] sm:$0xff]
        %v305 = vld [vmem:[#allocation2 + $0x50] sm:$0xff]
        %v306 = vld [vmem:[#allocation2 + $0x58] sm:$0xff]
        %v307 = vld [vmem:[#allocation2 + $0x60] sm:$0xff]
        %v308 = vld [vmem:[#allocation2 + $0x68] sm:$0xff]
        %v309 = vld [vmem:[#allocation2 + $0x70] sm:$0xff]
        %v310 = vld [vmem:[#allocation2 + $0x78] sm:$0xff]
        %v311 = vld [vmem:[%s228] sm:$0xff]
        %v312 = vld [vmem:[%s228 + $0x8] sm:$0xff]
        %v313 = vld [vmem:[%s228 + $0x10] sm:$0xff]
        %v314 = vld [vmem:[%s228 + $0x18] sm:$0xff]
        %v315 = vld [vmem:[%s228 + $0x20] sm:$0xff]
        %v316 = vld [vmem:[%s228 + $0x28] sm:$0xff]
        %v317 = vld [vmem:[%s228 + $0x30] sm:$0xff]
        %v318 = vld [vmem:[%s228 + $0x38] sm:$0xff]
        %v319 = vld [vmem:[%s228 + $0x40] sm:$0xff]
        %v320 = vld [vmem:[%s228 + $0x48] sm:$0xff]
        %v321 = vld [vmem:[%s228 + $0x50] sm:$0xff]
        %v322 = vld [vmem:[%s228 + $0x58] sm:$0xff]
        %v323 = vld [vmem:[%s228 + $0x60] sm:$0xff]
        %v324 = vld [vmem:[%s228 + $0x68] sm:$0xff]
        %v325 = vld [vmem:[%s228 + $0x70] sm:$0xff]
        %v326 = vld [vmem:[%s228 + $0x78] sm:$0xff]
        %v327 = vpack.c.bf16 %v312, %v311
        %v328 = vpack.c.bf16 %v314, %v313
        %v329 = vpack.c.bf16 %v316, %v315
        %v330 = vpack.c.bf16 %v318, %v317
        %v331 = vpack.c.bf16 %v320, %v319
        %v332 = vpack.c.bf16 %v322, %v321
        %v333 = vpack.c.bf16 %v324, %v323
        %v334 = vpack.c.bf16 %v326, %v325
        %v335 = vld [vmem:[%s237] sm:$0xff]
        %v336 = vld [vmem:[%s237 + $0x8] sm:$0xff]
        %v337 = vld [vmem:[%s237 + $0x10] sm:$0xff]
        %v338 = vld [vmem:[%s237 + $0x18] sm:$0xff]
        %v339 = vld [vmem:[%s237 + $0x20] sm:$0xff]
        %v340 = vld [vmem:[%s237 + $0x28] sm:$0xff]
        %v341 = vld [vmem:[%s237 + $0x30] sm:$0xff]
        %v342 = vld [vmem:[%s237 + $0x38] sm:$0xff]
        %v343 = vld [vmem:[%s237 + $0x40] sm:$0xff]
        %v344 = vld [vmem:[%s237 + $0x48] sm:$0xff]
        %v345 = vld [vmem:[%s237 + $0x50] sm:$0xff]
        %v346 = vld [vmem:[%s237 + $0x58] sm:$0xff]
        %v347 = vld [vmem:[%s237 + $0x60] sm:$0xff]
        %v348 = vld [vmem:[%s237 + $0x68] sm:$0xff]
        %v349 = vld [vmem:[%s237 + $0x70] sm:$0xff]
        %v350 = vld [vmem:[%s237 + $0x78] sm:$0xff]
        %v351 = vpack.c.bf16 %v336, %v335
        %v352 = vpack.c.bf16 %v338, %v337
        %v353 = vpack.c.bf16 %v340, %v339
        %v354 = vpack.c.bf16 %v342, %v341
        %v355 = vpack.c.bf16 %v344, %v343
        %v356 = vpack.c.bf16 %v346, %v345
        %v357 = vpack.c.bf16 %v348, %v347
        %v358 = vpack.c.bf16 %v350, %v349
        %359 = vmatprep.subr.bf16.mxu0 0
        %360 = vmatpush1.bf16.msra.mxu0 %v358
        %361 = vmatprep.subr.bf16.mxu0 0
        %362 = vmatpush1.bf16.msra.mxu0 %v357
        %363 = vmatprep.subr.bf16.mxu0 0
        %364 = vmatpush1.bf16.msra.mxu0 %v356
        %365 = vmatprep.subr.bf16.mxu0 0
        %366 = vmatpush1.bf16.msra.mxu0 %v355
        %367 = vmatprep.subr.bf16.mxu0 0
        %368 = vmatpush1.bf16.msra.mxu0 %v354
        %369 = vmatprep.subr.bf16.mxu0 0
        %370 = vmatpush1.bf16.msra.mxu0 %v353
        %371 = vmatprep.subr.bf16.mxu0 0
        %372 = vmatpush1.bf16.msra.mxu0 %v352
        %373 = vmatprep.subr.bf16.mxu0 0
        %374 = vmatpush1.bf16.msra.mxu0 %v351
        %375 = vmatprep.subr.bf16.mxu0 0
        %376 = vmatpush2.bf16.msra.mxu0 0
        %377 = vmatprep.subr.bf16.mxu0 0
        %378 = vmatpush2.bf16.msra.mxu0 0
        %379 = vmatprep.subr.bf16.mxu0 0
        %380 = vmatpush2.bf16.msra.mxu0 0
        %381 = vmatprep.subr.bf16.mxu0 0
        %382 = vmatpush2.bf16.msra.mxu0 0
        %383 = vmatprep.subr.bf16.mxu0 0
        %384 = vmatpush2.bf16.msra.mxu0 0
        %385 = vmatprep.subr.bf16.mxu0 0
        %386 = vmatpush2.bf16.msra.mxu0 0
        %387 = vmatprep.subr.bf16.mxu0 0
        %388 = vmatpush2.bf16.msra.mxu0 0
        %389 = vmatprep.subr.bf16.mxu0 0
        %390 = vmatpush2.bf16.msra.mxu0 0
        %391 = vmatprep.mubr.bf16.mxu0 0
        %392 = vmatmul.mubr.bf16.gmra.mxu0 %v327
        %v393 = vpop.f32.mrf.mxu0
        %v394 = vadd.f32 0.0, %v393
        %v395 = vpop.f32.mrf.mxu0
        %v396 = vpop.f32.mrf.mxu0
        %v397 = vadd.f32 0.0, %v396
        %v398 = vpop.f32.mrf.mxu0
        %399 = vmatprep.mubr.bf16.mxu0 0
        %400 = vmatmul.mubr.bf16.gmra.mxu0 %v328
        %v401 = vpop.f32.mrf.mxu0
        %v402 = vadd.f32 0.0, %v401
        %v403 = vpop.f32.mrf.mxu0
        %v404 = vpop.f32.mrf.mxu0
        %v405 = vadd.f32 0.0, %v404
        %v406 = vpop.f32.mrf.mxu0
        %407 = vmatprep.mubr.bf16.mxu0 0
        %408 = vmatmul.mubr.bf16.gmra.mxu0 %v329
        %v409 = vpop.f32.mrf.mxu0
        %v410 = vadd.f32 0.0, %v409
        %v411 = vpop.f32.mrf.mxu0
        %v412 = vpop.f32.mrf.mxu0
        %v413 = vadd.f32 0.0, %v412
        %v414 = vpop.f32.mrf.mxu0
        %415 = vmatprep.mubr.bf16.mxu0 0
        %416 = vmatmul.mubr.bf16.gmra.mxu0 %v330
        %v417 = vpop.f32.mrf.mxu0
        %v418 = vadd.f32 0.0, %v417
        %v419 = vpop.f32.mrf.mxu0
        %v420 = vpop.f32.mrf.mxu0
        %v421 = vadd.f32 0.0, %v420
        %v422 = vpop.f32.mrf.mxu0
        %423 = vmatprep.mubr.bf16.mxu0 0
        %424 = vmatmul.mubr.bf16.gmra.mxu0 %v331
        %v425 = vpop.f32.mrf.mxu0
        %v426 = vadd.f32 0.0, %v425
        %v427 = vpop.f32.mrf.mxu0
        %v428 = vpop.f32.mrf.mxu0
        %v429 = vadd.f32 0.0, %v428
        %v430 = vpop.f32.mrf.mxu0
        %431 = vmatprep.mubr.bf16.mxu0 0
        %432 = vmatmul.mubr.bf16.gmra.mxu0 %v332
        %v433 = vpop.f32.mrf.mxu0
        %v434 = vadd.f32 0.0, %v433
        %v435 = vpop.f32.mrf.mxu0
        %v436 = vpop.f32.mrf.mxu0
        %v437 = vadd.f32 0.0, %v436
        %v438 = vpop.f32.mrf.mxu0
        %439 = vmatprep.mubr.bf16.mxu0 0
        %440 = vmatmul.mubr.bf16.gmra.mxu0 %v333
        %v441 = vpop.f32.mrf.mxu0
        %v442 = vadd.f32 0.0, %v441
        %v443 = vpop.f32.mrf.mxu0
        %v444 = vpop.f32.mrf.mxu0
        %v445 = vadd.f32 0.0, %v444
        %v446 = vpop.f32.mrf.mxu0
        %447 = vmatprep.mubr.bf16.mxu0 0
        %448 = vmatmul.mubr.bf16.gmra.mxu0 %v334
        %v449 = vpop.f32.mrf.mxu0
        %v450 = vadd.f32 0.0, %v449
        %v451 = vpop.f32.mrf.mxu0
        %v452 = vpop.f32.mrf.mxu0
        %v453 = vadd.f32 0.0, %v452
        %v454 = vpop.f32.mrf.mxu0
        %455 = vdwg.mxu0
        %v456 = vadd.f32 %v295, %v394
        %v457 = vadd.f32 %v296, %v397
        %v458 = vadd.f32 %v297, %v402
        %v459 = vadd.f32 %v298, %v405
        %v460 = vadd.f32 %v299, %v410
        %v461 = vadd.f32 %v300, %v413
        %v462 = vadd.f32 %v301, %v418
        %v463 = vadd.f32 %v302, %v421
        %v464 = vadd.f32 %v303, %v426
        %v465 = vadd.f32 %v304, %v429
        %v466 = vadd.f32 %v305, %v434
        %v467 = vadd.f32 %v306, %v437
        %v468 = vadd.f32 %v307, %v442
        %v469 = vadd.f32 %v308, %v445
        %v470 = vadd.f32 %v309, %v450
        %v471 = vadd.f32 %v310, %v453
        %472 = vst [vmem:[#allocation2] sm:$0xff] %v456
        %473 = vst [vmem:[#allocation2 + $0x8] sm:$0xff] %v457
        %474 = vst [vmem:[#allocation2 + $0x10] sm:$0xff] %v458
        %475 = vst [vmem:[#allocation2 + $0x18] sm:$0xff] %v459
        %476 = vst [vmem:[#allocation2 + $0x20] sm:$0xff] %v460
        %477 = vst [vmem:[#allocation2 + $0x28] sm:$0xff] %v461
        %478 = vst [vmem:[#allocation2 + $0x30] sm:$0xff] %v462
        %479 = vst [vmem:[#allocation2 + $0x38] sm:$0xff] %v463
        %480 = vst [vmem:[#allocation2 + $0x40] sm:$0xff] %v464
        %481 = vst [vmem:[#allocation2 + $0x48] sm:$0xff] %v465
        %482 = vst [vmem:[#allocation2 + $0x50] sm:$0xff] %v466
        %483 = vst [vmem:[#allocation2 + $0x58] sm:$0xff] %v467
        %484 = vst [vmem:[#allocation2 + $0x60] sm:$0xff] %v468
        %485 = vst [vmem:[#allocation2 + $0x68] sm:$0xff] %v469
        %486 = vst [vmem:[#allocation2 + $0x70] sm:$0xff] %v470
        %487 = vst [vmem:[#allocation2 + $0x78] sm:$0xff] %v471
        // Predicated region
        $region45: #{tpu_custom_call.1} parent=31 // pred_check
          %p488 = pneg %p275
        $region46: #{tpu_custom_call.1} parent=31 // pred_check_branch
          %490 = sbr.rel (%p488) target = $region48
        $region47: #{tpu_custom_call.1} parent=31 // pred_region
          %v491 = vld [vmem:[#allocation2] sm:$0xff]
          %v492 = vld [vmem:[#allocation2 + $0x8] sm:$0xff]
          %v493 = vld [vmem:[#allocation2 + $0x10] sm:$0xff]
          %v494 = vld [vmem:[#allocation2 + $0x18] sm:$0xff]
          %v495 = vld [vmem:[#allocation2 + $0x20] sm:$0xff]
          %v496 = vld [vmem:[#allocation2 + $0x28] sm:$0xff]
          %v497 = vld [vmem:[#allocation2 + $0x30] sm:$0xff]
          %v498 = vld [vmem:[#allocation2 + $0x38] sm:$0xff]
          %v499 = vld [vmem:[#allocation2 + $0x40] sm:$0xff]
          %v500 = vld [vmem:[#allocation2 + $0x48] sm:$0xff]
          %v501 = vld [vmem:[#allocation2 + $0x50] sm:$0xff]
          %v502 = vld [vmem:[#allocation2 + $0x58] sm:$0xff]
          %v503 = vld [vmem:[#allocation2 + $0x60] sm:$0xff]
          %v504 = vld [vmem:[#allocation2 + $0x68] sm:$0xff]
          %v505 = vld [vmem:[#allocation2 + $0x70] sm:$0xff]
          %v506 = vld [vmem:[#allocation2 + $0x78] sm:$0xff]
          %v507 = vld [vmem:[%s272] sm:$0x1]
          %v509 = vlaneseq
          %v510 = vshrl.u32 %v509, 7
          %v511 = vsub.s32 0, %v510
          %v512 = vrot.slane %v507, %v511
          %v514 = vadd.f32 %v491, %v512
          %v515 = vadd.f32 %v492, %v512
          %v516 = vadd.f32 %v493, %v512
          %v517 = vadd.f32 %v494, %v512
          %v518 = vadd.f32 %v495, %v512
          %v519 = vadd.f32 %v496, %v512
          %v520 = vadd.f32 %v497, %v512
          %v521 = vadd.f32 %v498, %v512
          %v522 = vadd.f32 %v499, %v512
          %v523 = vadd.f32 %v500, %v512
          %v524 = vadd.f32 %v501, %v512
          %v525 = vadd.f32 %v502, %v512
          %v526 = vadd.f32 %v503, %v512
          %v527 = vadd.f32 %v504, %v512
          %v528 = vadd.f32 %v505, %v512
          %v529 = vadd.f32 %v506, %v512
          %530 = vst [vmem:[%s267] sm:$0xff] %v514
          %531 = vst [vmem:[%s267 + $0x8] sm:$0xff] %v515
          %532 = vst [vmem:[%s267 + $0x10] sm:$0xff] %v516
          %533 = vst [vmem:[%s267 + $0x18] sm:$0xff] %v517
          %534 = vst [vmem:[%s267 + $0x20] sm:$0xff] %v518
          %535 = vst [vmem:[%s267 + $0x28] sm:$0xff] %v519
          %536 = vst [vmem:[%s267 + $0x30] sm:$0xff] %v520
          %537 = vst [vmem:[%s267 + $0x38] sm:$0xff] %v521
          %538 = vst [vmem:[%s267 + $0x40] sm:$0xff] %v522
          %539 = vst [vmem:[%s267 + $0x48] sm:$0xff] %v523
          %540 = vst [vmem:[%s267 + $0x50] sm:$0xff] %v524
          %541 = vst [vmem:[%s267 + $0x58] sm:$0xff] %v525
          %542 = vst [vmem:[%s267 + $0x60] sm:$0xff] %v526
          %543 = vst [vmem:[%s267 + $0x68] sm:$0xff] %v527
          %544 = vst [vmem:[%s267 + $0x70] sm:$0xff] %v528
          %545 = vst [vmem:[%s267 + $0x78] sm:$0xff] %v529
        $region48: #{tpu_custom_call.1} parent=31 // pred_fallthru
          _
        %s546 = sand.u32 %s134, 1
        %s547 = scalar_lea.sflag [#allocation5], %s546
        %s548 = sand.u32 %s134, 1
        %s549 = smul.addr %s548, 128
        %s550 = scalar_lea.vmem [#allocation8], %s549
        // Predicated region
        $region49: #{tpu_custom_call.1} parent=31 // pred_check
          %p551 = pneg %p144
        $region50: #{tpu_custom_call.1} parent=31 // pred_check_branch
          %553 = sbr.rel (%p551) target = $region52
        $region51: #{tpu_custom_call.1} parent=31 // pred_region
          %s554 = smul.u32 16, %s28
          %s556 = ssub.s32 2048, 2048
          %557 = vsyncadd %s547, %s556
          %s558 = smul.addr %s554, 3
          %s559 = sadd.s32 %s29, %s558
          %s560 = smul.addr %s559, 128
          %s561 = scalar_lea.hbm %s3, %s560
          %s562 = sshll.u32 %s550, 4
          %s563 = int_to_ptr.vmem [resolvable:$true] %s562
          %568 = dma.vmem_to_hbm [thread:$0]  %s563, 2048, %s561, %s547, 128, 384, 8
        $region52: #{tpu_custom_call.1} parent=31 // pred_fallthru
          _
      $region32: #{tpu_custom_call.1} parent=5 // pred_fallthru
        _
      %p569 = scmp.le.s32.totalorder 2, %s18
      // Predicated region
      $region53: #{tpu_custom_call.1} parent=5 // pred_check
        %p570 = pneg %p569
      $region54: #{tpu_custom_call.1} parent=5 // pred_check_branch
        %572 = sbr.rel (%p570) target = $region56
      $region55: #{tpu_custom_call.1} parent=5 // pred_region
        %s573 = ssub.s32 %s18, 2
        // Predicated region
        $region57: #{tpu_custom_call.1} parent=55 // pred_check
          %p574 = pneg %p150
        $region58: #{tpu_custom_call.1} parent=55 // pred_check_branch
          %576 = sbr.rel (%p574) target = $region60
        $region59: #{tpu_custom_call.1} parent=55 // pred_region
          %s577 = sand.u32 %s135, 1
          %s578 = scalar_lea.sflag [#allocation5], %s577
          %s579 = sand.u32 %s135, 1
          %s580 = smul.addr %s579, 128
          %s581 = scalar_lea.vmem [#allocation8], %s580
          %582 = dma.done %s578, 2048
        $region60: #{tpu_custom_call.1} parent=55 // pred_fallthru
          _
      $region56: #{tpu_custom_call.1} parent=5 // pred_fallthru
        _
    $region6: #{tpu_custom_call.1} parent=1 // loop_footer
      %s22 = sadd.s32 1, %s18
    $region7: #{tpu_custom_call.1} parent=1 // loop_footer_branch
      %17 = sbr.rel target = $region3
    $region8: #{tpu_custom_call.1} parent=1 // loop_exit
      _
    %583 = vsyncpa [#allocation4], 1
    %s584 = scalar_lea.sflag [#allocation4], 1
    %585 = vsyncpa %s584, 1
    %586 = vsyncpa [#allocation7], 1
    %s587 = scalar_lea.sflag [#allocation7], 1
    %588 = vsyncpa %s587, 1
    %589 = vsyncpa [#allocation5], 1
    %s590 = scalar_lea.sflag [#allocation5], 1
    %591 = vsyncpa %s590, 1

</llo_original>
